<compile_context>
chip_gen: v7x
topology: tpu7x:2x2x1
jax: 0.10.0
libtpu: 0.0.40
codegen_flags: <defaults>
</compile_context>

<pallas_src>
import functools

import jax
import jax.numpy as jnp
from jax.experimental import pallas as pl
from jax.experimental.pallas import tpu as pltpu


def _round_up(n, m):
    return ((n + m - 1) // m) * m


def _bn_residual_dsconv_kernel(x_ref, x_left_ref, x_right_ref, dw_w_ref,
                               pw_w_ref, b_ref, o_ref, *, kernel_size,
                               apply_relu):
    # x_ref       : (C, T)      current length tile of x (batch dim squeezed)
    # x_left_ref  : (C, 128)    previous 128 columns of x (bogus on first tile -> masked)
    # x_right_ref : (C, 128)    next 128 columns of x     (bogus on last tile  -> masked)
    # dw_w_ref    : (C, K)      depthwise taps (f32)
    # pw_w_ref    : (C_out, C)  pointwise 1x1 weights (bf16 for the MXU by default)
    # b_ref       : (C_out, 1)  fused bias = pw_bias + pw_weight @ dw_bias (f32)
    # o_ref       : (C_out, T)
    C, T = x_ref.shape
    K = kernel_size
    pad = K // 2

    l = pl.program_id(1)
    n_l = pl.num_programs(1)

    xc = x_ref[...].astype(jnp.float32)                        # (C, T)

    if pad > 0:
        # 128-lane halo blocks; Conv1d zero padding at the sequence ends -> mask to 0.
        left = x_left_ref[...].astype(jnp.float32)             # (C, 128)
        left = jnp.where(l == 0, jnp.zeros_like(left), left)
        right = x_right_ref[...].astype(jnp.float32)           # (C, 128)
        right = jnp.where(l == n_l - 1, jnp.zeros_like(right), right)

        # Lane-aligned window: every piece is a multiple of 128 lanes wide, so the concat and
        # the [:, 128:128+T] slices below never sit at a misaligned lane offset.
        window = jnp.concatenate([left, xc, right], axis=1)    # (C, T + 256)
        W = T + 256

        # Depthwise K-tap FIR: lane shifts on the XLU (pltpu.roll, co-issues with VPU MACs),
        # MACs in f32 on the VPU (v5e has no bf16 VALU).  acc starts from the first tap.
        acc = None
        for t in range(K):
            if t == pad:
                shifted = xc                                   # shift 0 -> the tile itself
            else:
                shifted = pltpu.roll(window, shift=(pad - t) % W, axis=1)[:, 128:128 + T]
            tap = dw_w_ref[:, t:t + 1] * shifted
            acc = tap if acc is None else acc + tap
    else:
        acc = dw_w_ref[:, 0:1] * xc                            # K == 1

    # Pointwise 1x1 conv == channel-mixing matmul: bf16 operands, f32 accumulation on the MXU.
    # Depthwise bias already fused into b_ref by the wrapper; bias broadcast is hoisted
    # (added once after the dot, never inside the tap loop).
    y = jnp.dot(pw_w_ref[...], acc.astype(pw_w_ref.dtype),
                preferred_element_type=jnp.float32) + b_ref[...]
    if apply_relu:
        y = jnp.maximum(y, 0.0)

    # BatchNormResidual epilogue: residual add (dropout p=0 is identity); lane-dense store.
    o_ref[...] = (y + xc).astype(o_ref.dtype)


def _derive_tile_l(C, C_out, itemsize, budget_bytes=20 * 1024 * 1024, max_tile=2048):
    """Largest multiple-of-128 length tile whose per-step footprint (double-buffered x/out
    streams + f32 in-kernel temporaries) fits the budget; safe for v7x's 64 MiB VMEM."""
    per_col = 2 * (C + C_out) * itemsize + 4 * (C + 3 * max(C, C_out))
    t = budget_bytes // max(per_col, 1)
    t = min(max_tile, t)
    t = (t // 128) * 128
    return max(128, int(t))


def batchnorm_residual_forward(x, dw_weight, dw_bias, pw_weight, pw_bias,
                               kernel_size, *, activation="relu", tile_l=None,
                               mxu_dtype=jnp.bfloat16):
    """out = relu(pointwise(depthwise(x))) + x   (BatchNormResidual forward, see header).

    x: (B, C, L) in NCL layout (f32 or bf16).  Returns (B, C, L) in x.dtype.
    dw_weight: (C, K)      (PyTorch depthwise Conv1d stores (C, 1, K): squeeze dim 1)
    dw_bias  : (C, 1)      (PyTorch stores (C,): reshape to (C, 1))
    pw_weight: (C_out, C)  (PyTorch pointwise Conv1d stores (C_out, C, 1): squeeze dim 2)
    pw_bias  : (C_out, 1)
    """
    B, C, L = x.shape
    C_out = pw_weight.shape[0]
    K = int(kernel_size)
    if C_out != C:
        raise ValueError("residual add (y += x) requires C_out == C_in")
    if K % 2 != 1:
        raise ValueError("odd kernel_size required so L_out == L for the residual add")
    pad = K // 2
    if pad > 128:
        raise ValueError("kernel_size too large: halo must fit in one 128-lane block")

    # Fuse depthwise bias into the pointwise bias (exact, in f32):
    #   pw @ (dw(x) + b_dw) + b_pw == pw @ dw(x) + (pw @ b_dw + b_pw)
    dw_w = dw_weight.astype(jnp.float32)
    bias_eff = (pw_bias.astype(jnp.float32)
                + pw_weight.astype(jnp.float32) @ dw_bias.astype(jnp.float32))
    pw_w_mxu = pw_weight.astype(mxu_dtype)      # MXU is bf16-native on v5e/v6e/v7x

    itemsize = jnp.dtype(x.dtype).itemsize

    # Length tiling: pad L to a multiple of 128 (<= 127 zero columns; identical to the Conv1d
    # zero padding for all real output positions), pick the largest VMEM-budgeted tile that
    # divides the padded length.  Stores stay lane-dense; no single-tile VMEM blowup possible.
    L128 = _round_up(L, 128)
    if tile_l is None:
        tile_target = _derive_tile_l(C, C_out, itemsize)
    else:
        tile_target = max(128, _round_up(int(tile_l), 128))
    tile_l = min(tile_target, L128)
    while L128 % tile_l:
        tile_l -= 128
    L_pad = L128
    n_l = L_pad // tile_l
    r = tile_l // 128                  # 128-lane blocks per length tile
    n_lane_blocks = L_pad // 128

    xp = x if L_pad == L else jnp.pad(x, ((0, 0), (0, 0), (0, L_pad - L)))

    kernel = functools.partial(_bn_residual_dsconv_kernel,
                               kernel_size=K,
                               apply_relu=(activation == "relu"))

    flops = 2 * B * C * K * L_pad + 2 * B * C_out * C * L_pad + 3 * B * C_out * L_pad
    bytes_accessed = (itemsize * B * (C * L_pad + n_l * 2 * C * 128 + C_out * L_pad)
                      + 4 * C * K + jnp.dtype(mxu_dtype).itemsize * C_out * C + 4 * C_out)

    # VMEM: double-buffered streamed blocks + weights + f32 temporaries, 1.5x headroom,
    # capped well below v7x's 64 MiB physical VMEM.
    stream_bytes = 2 * itemsize * (C * tile_l + 2 * C * 128 + C_out * tile_l)
    weight_bytes = 2 * (4 * C * K + jnp.dtype(mxu_dtype).itemsize * C_out * C + 4 * C_out)
    temp_bytes = 4 * (C * (tile_l + 256) + 3 * max(C, C_out) * tile_l)
    vmem_limit = int(min(48 * 1024 * 1024,
                         max(32 * 1024 * 1024,
                             (3 * (stream_bytes + weight_bytes + temp_bytes)) // 2)))

    out = pl.pallas_call(
        kernel,
        out_shape=jax.ShapeDtypeStruct((B, C_out, L_pad), x.dtype),
        grid_spec=pltpu.PrefetchScalarGridSpec(
            num_scalar_prefetch=0,
            grid=(B, n_l),
            in_specs=[
                # current length tile of x
                pl.BlockSpec((None, C, tile_l), lambda b, l: (b, 0, l)),
                # left halo: previous 128 columns (clamped at the start; masked in-kernel)
                pl.BlockSpec((None, C, 128),
                             lambda b, l: (b, 0, jnp.maximum(l * r - 1, 0))),
                # right halo: next 128 columns (clamped at the end; masked in-kernel)
                pl.BlockSpec((None, C, 128),
                             lambda b, l: (b, 0, jnp.minimum((l + 1) * r,
                                                             n_lane_blocks - 1))),
                pl.BlockSpec((C, K), lambda b, l: (0, 0)),
                pl.BlockSpec((C_out, C), lambda b, l: (0, 0)),
                pl.BlockSpec((C_out, 1), lambda b, l: (0, 0)),
            ],
            out_specs=pl.BlockSpec((None, C_out, tile_l), lambda b, l: (b, 0, l)),
        ),
        compiler_params=pltpu.CompilerParams(
            # No cross-tile carry -> both axes can shard across v7x's dual TensorCores.
            dimension_semantics=("parallel", "parallel"),
            vmem_limit_bytes=vmem_limit,
        ),
        cost_estimate=pl.CostEstimate(flops=int(flops), transcendentals=0,
                                      bytes_accessed=int(bytes_accessed)),
    )(xp, xp, xp, dw_w, pw_w_mxu, bias_eff)

    return out if L_pad == L else out[:, :, :L]


def _reference(x, dw_weight, dw_bias, pw_weight, pw_bias, kernel_size, apply_relu=True):
    """Pure-JAX f32 reference matching the PyTorch module's forward semantics."""
    pad = kernel_size // 2
    L = x.shape[2]
    xp = jnp.pad(x, ((0, 0), (0, 0), (pad, pad)))
    dw = jnp.zeros(x.shape, jnp.float32)
    for t in range(kernel_size):
        dw = dw + dw_weight[None, :, t:t + 1] * xp[:, :, t:t + L]
    dw = dw + dw_bias[None, :, :]
    y = jnp.einsum("oc,bcl->bol", pw_weight, dw) + pw_bias[None, :, :]
    if apply_relu:
        y = jnp.maximum(y, 0.0)
    return y + x   # batch_norm output is discarded by the original forward; dropout p=0


if __name__ == "__main__":
    key = jax.random.PRNGKey(0)

    def run_case(B, C, L, K, tile_l=None, mxu_dtype=jnp.bfloat16, atol=5e-2, rtol=5e-2):
        ks = jax.random.split(jax.random.fold_in(key, 100000 * L + 1000 * K + C), 5)
        x = jax.random.normal(ks[0], (B, C, L), jnp.float32)
        dw_w = jax.random.normal(ks[1], (C, K), jnp.float32) * 0.5
        dw_b = jax.random.normal(ks[2], (C, 1), jnp.float32) * 0.1
        pw_w = jax.random.normal(ks[3], (C, C), jnp.float32) * 0.5
        pw_b = jax.random.normal(ks[4], (C, 1), jnp.float32) * 0.1

        out = batchnorm_residual_forward(x, dw_w, dw_b, pw_w, pw_b, K,
                                         tile_l=tile_l, mxu_dtype=mxu_dtype)
        out = jax.block_until_ready(out)
        ref = _reference(x, dw_w, dw_b, pw_w, pw_b, K)
        assert out.shape == ref.shape, (out.shape, ref.shape)
        max_err = float(jnp.max(jnp.abs(out - ref)))
        assert jnp.allclose(out, ref, atol=atol, rtol=rtol), (
            f"mismatch vs reference: B={B} C={C} L={L} K={K} tile_l={tile_l} "
            f"mxu_dtype={jnp.dtype(mxu_dtype).name} max_abs_err={max_err:.3e}")

    # Module-scale single-tile case (batch=2, channels=4, length=16):
    #  - f32 MXU path validates halo / tiling / bias-fusion logic at tight tolerance,
    #  - bf16 MXU path (production default) checked at bf16-appropriate tolerance.
    run_case(B=2, C=4, L=16, K=3, mxu_dtype=jnp.float32, atol=1e-4, rtol=1e-4)
    run_case(B=2, C=4, L=16, K=3)

    # Multi-tile case exercising length tiling + 128-lane left/right halo blocks.
    run_case(B=2, C=8, L=256, K=5, tile_l=128, mxu_dtype=jnp.float32, atol=1e-4, rtol=1e-4)
    run_case(B=2, C=8, L=256, K=5, tile_l=128)

    # Ragged L (not a multiple of 128): wrapper pads to 256 and slices the output back to 200.
    run_case(B=1, C=8, L=200, K=3, tile_l=128, mxu_dtype=jnp.float32, atol=1e-4, rtol=1e-4)

    print("KERNEL_OK")
</pallas_src>

<mosaic_0001>
module attributes {stable_mosaic.version = 11 : i64} {
  func.func @_bn_residual_dsconv_kernel(%arg0: i32, %arg1: i32, %arg2: memref<1x4x128xf32, #tpu.memory_space<vmem>>, %arg3: memref<1x4x128xf32, #tpu.memory_space<vmem>>, %arg4: memref<1x4x128xf32, #tpu.memory_space<vmem>>, %arg5: memref<4x3xf32, #tpu.memory_space<vmem>>, %arg6: memref<4x4xf32, #tpu.memory_space<vmem>>, %arg7: memref<4x1xf32, #tpu.memory_space<vmem>>, %arg8: memref<1x4x128xf32, #tpu.memory_space<vmem>>) attributes {dimension_semantics = [#tpu.dimension_semantics<parallel>, #tpu.dimension_semantics<parallel>], iteration_bounds = array<i64: 2, 1>, scalar_prefetch = 0 : i64, scratch_operands = 0 : i64, tpu.core_type = #tpu.core_type<tc>, window_params = [{transform_indices = @transform_0, window_bounds = array<i64: 1, 4, 128>}, {transform_indices = @transform_1, window_bounds = array<i64: 1, 4, 128>}, {transform_indices = @transform_2, window_bounds = array<i64: 1, 4, 128>}, {pipeline_mode = #tpu.pipeline_mode<synchronous>, transform_indices = @transform_3, window_bounds = array<i64: 4, 3>}, {pipeline_mode = #tpu.pipeline_mode<synchronous>, transform_indices = @transform_4, window_bounds = array<i64: 4, 4>}, {pipeline_mode = #tpu.pipeline_mode<synchronous>, transform_indices = @transform_5, window_bounds = array<i64: 4, 1>}, {transform_indices = @transform_6, window_bounds = array<i64: 1, 4, 128>}]} {
    %c0 = arith.constant 0 : index
    %c0_0 = arith.constant 0 : index
    %c0_1 = arith.constant 0 : index
    %0 = vector.load %arg2[%c0, %c0_0, %c0_1] : memref<1x4x128xf32, #tpu.memory_space<vmem>>, vector<1x4x128xf32>
    %1 = vector.shape_cast %0 : vector<1x4x128xf32> to vector<4x128xf32>
    %c0_2 = arith.constant 0 : index
    %c0_3 = arith.constant 0 : index
    %c0_4 = arith.constant 0 : index
    %2 = vector.load %arg3[%c0_2, %c0_3, %c0_4] : memref<1x4x128xf32, #tpu.memory_space<vmem>>, vector<1x4x128xf32>
    %3 = vector.shape_cast %2 : vector<1x4x128xf32> to vector<4x128xf32>
    %c0_i32 = arith.constant 0 : i32
    %4 = arith.cmpi eq, %arg1, %c0_i32 : i32
    %cst = arith.constant 0.000000e+00 : f32
    %5 = vector.broadcast %cst : f32 to vector<4x128xf32>
    %6 = arith.select %4, %5, %3 : vector<4x128xf32>
    %c0_5 = arith.constant 0 : index
    %c0_6 = arith.constant 0 : index
    %c0_7 = arith.constant 0 : index
    %7 = vector.load %arg4[%c0_5, %c0_6, %c0_7] : memref<1x4x128xf32, #tpu.memory_space<vmem>>, vector<1x4x128xf32>
    %8 = vector.shape_cast %7 : vector<1x4x128xf32> to vector<4x128xf32>
    %c0_i32_8 = arith.constant 0 : i32
    %9 = arith.cmpi eq, %arg1, %c0_i32_8 : i32
    %cst_9 = arith.constant 0.000000e+00 : f32
    %10 = vector.broadcast %cst_9 : f32 to vector<4x128xf32>
    %11 = arith.select %9, %10, %8 : vector<4x128xf32>
    %12 = tpu.concatenate %6, %1, %11 in 1 : vector<4x128xf32>, vector<4x128xf32>, vector<4x128xf32> -> vector<4x384xf32>
    %c1_i32 = arith.constant 1 : i32
    %13 = tpu.dynamic_rotate %12 by %c1_i32 dim 1 : vector<4x384xf32>, i32 -> vector<4x384xf32>
    %14 = vector.extract_strided_slice %13 {offsets = [0, 128], sizes = [4, 128], strides = [1, 1]} : vector<4x384xf32> to vector<4x128xf32>
    %c0_10 = arith.constant 0 : index
    %c0_11 = arith.constant 0 : index
    %15 = vector.load %arg5[%c0_10, %c0_11] : memref<4x3xf32, #tpu.memory_space<vmem>>, vector<4x1xf32>
    %16 = vector.broadcast %15 : vector<4x1xf32> to vector<4x128xf32>
    %17 = arith.mulf %16, %14 : vector<4x128xf32>
    %c0_12 = arith.constant 0 : index
    %c1 = arith.constant 1 : index
    %18 = vector.load %arg5[%c0_12, %c1] : memref<4x3xf32, #tpu.memory_space<vmem>>, vector<4x1xf32>
    %19 = vector.broadcast %18 : vector<4x1xf32> to vector<4x128xf32>
    %20 = arith.mulf %19, %1 : vector<4x128xf32>
    %21 = arith.addf %17, %20 : vector<4x128xf32>
    %c383_i32 = arith.constant 383 : i32
    %22 = tpu.dynamic_rotate %12 by %c383_i32 dim 1 : vector<4x384xf32>, i32 -> vector<4x384xf32>
    %23 = vector.extract_strided_slice %22 {offsets = [0, 128], sizes = [4, 128], strides = [1, 1]} : vector<4x384xf32> to vector<4x128xf32>
    %c0_13 = arith.constant 0 : index
    %c2 = arith.constant 2 : index
    %24 = vector.load %arg5[%c0_13, %c2] : memref<4x3xf32, #tpu.memory_space<vmem>>, vector<4x1xf32>
    %25 = vector.broadcast %24 : vector<4x1xf32> to vector<4x128xf32>
    %26 = arith.mulf %25, %23 : vector<4x128xf32>
    %27 = arith.addf %21, %26 : vector<4x128xf32>
    %c0_14 = arith.constant 0 : index
    %c0_15 = arith.constant 0 : index
    %28 = vector.load %arg6[%c0_14, %c0_15] : memref<4x4xf32, #tpu.memory_space<vmem>>, vector<4x4xf32>
    %cst_16 = arith.constant dense<0.000000e+00> : vector<4x128xf32>
    %29 = tpu.matmul %28, %27, %cst_16 {dimension_numbers = #tpu.dot_dimension_numbers<[1], [0], [0], [1], [0, 0, 1, 1], [], []>} : vector<4x4xf32>, vector<4x128xf32>, vector<4x128xf32> -> vector<4x128xf32>
    %c0_17 = arith.constant 0 : index
    %c0_18 = arith.constant 0 : index
    %30 = vector.load %arg7[%c0_17, %c0_18] : memref<4x1xf32, #tpu.memory_space<vmem>>, vector<4x1xf32>
    %31 = vector.broadcast %30 : vector<4x1xf32> to vector<4x128xf32>
    %32 = arith.addf %29, %31 : vector<4x128xf32>
    %cst_19 = arith.constant 0.000000e+00 : f32
    %33 = vector.broadcast %cst_19 : f32 to vector<4x128xf32>
    %34 = arith.maximumf %32, %33 : vector<4x128xf32>
    %35 = arith.addf %34, %1 : vector<4x128xf32>
    %c0_20 = arith.constant 0 : index
    %c0_21 = arith.constant 0 : index
    %c0_22 = arith.constant 0 : index
    %36 = vector.load %arg8[%c0_20, %c0_21, %c0_22] : memref<1x4x128xf32, #tpu.memory_space<vmem>>, vector<1x4x128xf32>
    %37 = vector.shape_cast %36 : vector<1x4x128xf32> to vector<4x128xf32>
    %38 = vector.shape_cast %35 : vector<4x128xf32> to vector<1x4x128xf32>
    tpu.vector_store %arg8[%c0_20, %c0_21, %c0_22], %38 {strides = array<i32>} : memref<1x4x128xf32, #tpu.memory_space<vmem>>, vector<1x4x128xf32>,
    return
  }
  func.func @transform_0(%arg0: i32, %arg1: i32) -> (i32, i32, i32) {
    %c0_i32 = arith.constant 0 : i32
    %c0_i32_0 = arith.constant 0 : i32
    return %arg0, %c0_i32, %arg1 : i32, i32, i32
  }
  func.func @transform_1(%arg0: i32, %arg1: i32) -> (i32, i32, i32) {
    %c1_i32 = arith.constant 1 : i32
    %0 = arith.muli %arg1, %c1_i32 : i32
    %c1_i32_0 = arith.constant 1 : i32
    %1 = arith.subi %0, %c1_i32_0 : i32
    %c0_i32 = arith.constant 0 : i32
    %2 = arith.maxsi %1, %c0_i32 : i32
    %c0_i32_1 = arith.constant 0 : i32
    %c0_i32_2 = arith.constant 0 : i32
    return %arg0, %c0_i32_1, %2 : i32, i32, i32
  }
  func.func @transform_2(%arg0: i32, %arg1: i32) -> (i32, i32, i32) {
    %c1_i32 = arith.constant 1 : i32
    %0 = arith.addi %arg1, %c1_i32 : i32
    %c1_i32_0 = arith.constant 1 : i32
    %1 = arith.muli %0, %c1_i32_0 : i32
    %c0_i32 = arith.constant 0 : i32
    %2 = arith.minsi %1, %c0_i32 : i32
    %c0_i32_1 = arith.constant 0 : i32
    %c0_i32_2 = arith.constant 0 : i32
    return %arg0, %c0_i32_1, %2 : i32, i32, i32
  }
  func.func @transform_3(%arg0: i32, %arg1: i32) -> (i32, i32) {
    %c0_i32 = arith.constant 0 : i32
    %c0_i32_0 = arith.constant 0 : i32
    %c0_i32_1 = arith.constant 0 : i32
    return %c0_i32, %c0_i32_0 : i32, i32
  }
  func.func @transform_4(%arg0: i32, %arg1: i32) -> (i32, i32) {
    %c0_i32 = arith.constant 0 : i32
    %c0_i32_0 = arith.constant 0 : i32
    %c0_i32_1 = arith.constant 0 : i32
    return %c0_i32, %c0_i32_0 : i32, i32
  }
  func.func @transform_5(%arg0: i32, %arg1: i32) -> (i32, i32) {
    %c0_i32 = arith.constant 0 : i32
    %c0_i32_0 = arith.constant 0 : i32
    %c0_i32_1 = arith.constant 0 : i32
    return %c0_i32, %c0_i32_0 : i32, i32
  }
  func.func @transform_6(%arg0: i32, %arg1: i32) -> (i32, i32, i32) {
    %c0_i32 = arith.constant 0 : i32
    %c0_i32_0 = arith.constant 0 : i32
    return %arg0, %c0_i32, %arg1 : i32, i32, i32
  }
}

</mosaic_0001>

<llo_original>
// kernel: tpu_custom_call.1
$region0: #{tpu_custom_call.1}
  #allocation0 [shape = 'u32[]', space=smem, size = 0x4, offset = 0x4, fixed_abs, tag = 'smem constant byte address 0x4 - core index']
  #allocation1 [shape = 'u32[144,128]{1,0:T(1,128)}', space=vmem, size = 0x12000, scoped, tag = 'internal scratch']
  %s0 = inlined_call_operand.hbm [shape: f32[2,4,128], index: 0, kind: input, shape index: {}]
  %s1 = inlined_call_operand.vmem [shape: f32[2,4,128], index: 1, kind: input, shape index: {}]
  %s2 = inlined_call_operand.hbm [shape: f32[2,4,128], index: 2, kind: input, shape index: {}]
  %s3 = inlined_call_operand.vmem [shape: f32[4,3], index: 3, kind: input, shape index: {}]
  %s4 = inlined_call_operand.vmem [shape: f32[4,4], index: 4, kind: input, shape index: {}]
  %s5 = inlined_call_operand.vmem [shape: f32[4,1], index: 5, kind: input, shape index: {}]
  %s6 = inlined_call_operand.hbm [shape: f32[2,4,128], index: 6, kind: output, shape index: {}]
  %s7 = sld [smem:[#allocation0]]
  $region65: #{tpu_custom_call.1} parent=0
    _
  %s9 = ssub.s32 1, %s7
  %s10 = scalar_select 0, %s9, %s7
  $region1: #{tpu_custom_call.1} parent=0
    #allocation2 [shape = 'u8[4096]{0}', space=vmem, size = 0x1000, scoped, tag = 'input window, operand 0']
    #allocation3 [shape = 's32[2]{0}', space=sflag, size = 0x8, scoped, tag = 'scoped memory for tpu_custom_call.1']
    #allocation4 [shape = 's32[2]{0}', space=sflag, size = 0x8, scoped, tag = 'scoped memory for tpu_custom_call.1']
    #allocation5 [shape = 'u8[4096]{0}', space=vmem, size = 0x1000, scoped, tag = 'input window, operand 2']
    #allocation6 [shape = 's32[2]{0}', space=sflag, size = 0x8, scoped, tag = 'scoped memory for tpu_custom_call.1']
    #allocation7 [shape = 'u8[4096]{0}', space=vmem, size = 0x1000, scoped, tag = 'output window, operand 0']
    %11 = vsyncpa [#allocation3], 0
    %s12 = scalar_lea.sflag [#allocation3], 1
    %13 = vsyncpa %s12, 0
    %14 = vsyncpa [#allocation6], 0
    %s15 = scalar_lea.sflag [#allocation6], 1
    %16 = vsyncpa %s15, 0
    %17 = vsyncpa [#allocation4], 0
    %s18 = scalar_lea.sflag [#allocation4], 1
    %19 = vsyncpa %s18, 0
    loop: start=0, step=1, limit=4
    $region2: #{tpu_custom_call.1} parent=1 // loop_pre_header
      _
    $region3: #{tpu_custom_call.1} parent=1 // loop_header
      %s21 = sphi 0, %s25
      %p22 = scmp.ge.s32.totalorder %s21, 4
      %s28 = sphi 0, %s40
      %s29 = sphi 0, %s36
      %s30 = sphi 0, %s28
      %s31 = sphi 0, %s29
      %s32 = sphi 0, %s30
      %s33 = sphi 0, %s31
      %s45 = sphi 0, %s47
      %s48 = sphi 0, %s45
      %s49 = sphi 0, %s48
      %s65 = sphi 0, %s49
      %s79 = sphi 0, %s81
      %s82 = sphi 0, %s79
      %s83 = sphi 0, %s82
      %s99 = sphi 0, %s83
      %s113 = sphi 0, %s115
      %s116 = sphi 0, %s113
      %s117 = sphi 0, %s116
      %s133 = sphi 0, %s117
      %s137 = sphi 0, %s137
      %s139 = sphi 0, %s137
      %s140 = sphi 0, %s139
      %s154 = sphi 0, %s140
      %s158 = sphi 0, %s158
      %s160 = sphi 0, %s158
      %s161 = sphi 0, %s160
      %s175 = sphi 0, %s161
      %s179 = sphi 0, %s179
      %s181 = sphi 0, %s179
      %s182 = sphi 0, %s181
      %s196 = sphi 0, %s182
      %s204 = sphi 0, %s206
      %s207 = sphi 0, %s204
      %s208 = sphi 0, %s207
      %s224 = sphi 0, %s208
    $region4: #{tpu_custom_call.1} parent=1 // loop_header_branch
      %24 = sbr.rel (%p22) target = $region8
    $region5: #{tpu_custom_call.1} parent=1 // loop_body
      %s26 = ssub.s32 %s21, 1
      %s27 = ssub.s32 %s21, 2
      %s34 = sadd.s32 1, %s29
      %p35 = scmp.ge.s32.totalorder %s34, 1
      %s36 = scalar_select %p35, 0, %s34
      %s37 = sadd.s32 1, %s28
      %s38 = scalar_select %p35, %s37, %s28
      %p39 = scmp.ge.s32.totalorder %s38, 2
      %s40 = scalar_select %p39, 0, %s38
      %s41 = ssub.s32 %s28, %s40
      %s42 = ssub.s32 %s29, %s36
      %s43 = sor.u32 %s41, %s42
      %p44 = scmp.eq.s32.totalorder %s43, 0
      %s46 = sadd.s32 %s45, 1
      %s47 = scalar_select %p44, %s45, %s46
      %p50 = pneg %p44
      %p51 = scmp.eq.s32.totalorder %s21, 1
      %p52 = por %p50, %p51
      %p53 = scmp.ne.s32.totalorder %s45, %s48
      %p54 = scmp.eq.s32.totalorder %s21, 0
      %p55 = por %p53, %p54
      %p56 = scmp.ne.s32.totalorder %s45, %s48
      %p57 = scmp.eq.s32.totalorder %s26, 1
      %p58 = por %p56, %p57
      %p59 = scmp.ne.s32.totalorder %s48, %s49
      %p60 = scmp.eq.s32.totalorder %s26, 0
      %p61 = por %p59, %p60
      %p62 = scmp.ne.s32.totalorder %s48, %s49
      %p63 = scmp.eq.s32.totalorder %s27, 1
      %p64 = por %p62, %p63
      %p66 = scmp.ne.s32.totalorder %s49, %s65
      %p67 = scmp.eq.s32.totalorder %s27, 0
      %p68 = por %p66, %p67
      %s69 = ssub.s32 %s29, 1
      %p70 = scmp.gt.s32.totalorder %s69, 0
      %s71 = scalar_select %p70, %s69, 0
      %s72 = ssub.s32 %s36, 1
      %p73 = scmp.gt.s32.totalorder %s72, 0
      %s74 = scalar_select %p73, %s72, 0
      %s75 = ssub.s32 %s28, %s40
      %s76 = ssub.s32 %s71, %s74
      %s77 = sor.u32 %s75, %s76
      %p78 = scmp.eq.s32.totalorder %s77, 0
      %s80 = sadd.s32 %s79, 1
      %s81 = scalar_select %p78, %s79, %s80
      %p84 = pneg %p78
      %p85 = scmp.eq.s32.totalorder %s21, 1
      %p86 = por %p84, %p85
      %p87 = scmp.ne.s32.totalorder %s79, %s82
      %p88 = scmp.eq.s32.totalorder %s21, 0
      %p89 = por %p87, %p88
      %p90 = scmp.ne.s32.totalorder %s79, %s82
      %p91 = scmp.eq.s32.totalorder %s26, 1
      %p92 = por %p90, %p91
      %p93 = scmp.ne.s32.totalorder %s82, %s83
      %p94 = scmp.eq.s32.totalorder %s26, 0
      %p95 = por %p93, %p94
      %p96 = scmp.ne.s32.totalorder %s82, %s83
      %p97 = scmp.eq.s32.totalorder %s27, 1
      %p98 = por %p96, %p97
      %p100 = scmp.ne.s32.totalorder %s83, %s99
      %p101 = scmp.eq.s32.totalorder %s27, 0
      %p102 = por %p100, %p101
      %s103 = sadd.s32 %s29, 1
      %p104 = scmp.lt.s32.totalorder %s103, 0
      %s105 = scalar_select %p104, %s103, 0
      %s106 = sadd.s32 %s36, 1
      %p107 = scmp.lt.s32.totalorder %s106, 0
      %s108 = scalar_select %p107, %s106, 0
      %s109 = ssub.s32 %s28, %s40
      %s110 = ssub.s32 %s105, %s108
      %s111 = sor.u32 %s109, %s110
      %p112 = scmp.eq.s32.totalorder %s111, 0
      %s114 = sadd.s32 %s113, 1
      %s115 = scalar_select %p112, %s113, %s114
      %p118 = pneg %p112
      %p119 = scmp.eq.s32.totalorder %s21, 1
      %p120 = por %p118, %p119
      %p121 = scmp.ne.s32.totalorder %s113, %s116
      %p122 = scmp.eq.s32.totalorder %s21, 0
      %p123 = por %p121, %p122
      %p124 = scmp.ne.s32.totalorder %s113, %s116
      %p125 = scmp.eq.s32.totalorder %s26, 1
      %p126 = por %p124, %p125
      %p127 = scmp.ne.s32.totalorder %s116, %s117
      %p128 = scmp.eq.s32.totalorder %s26, 0
      %p129 = por %p127, %p128
      %p130 = scmp.ne.s32.totalorder %s116, %s117
      %p131 = scmp.eq.s32.totalorder %s27, 1
      %p132 = por %p130, %p131
      %p134 = scmp.ne.s32.totalorder %s117, %s133
      %p135 = scmp.eq.s32.totalorder %s27, 0
      %p136 = por %p134, %p135
      %s138 = sadd.s32 %s137, 1
      %p141 = scmp.eq.s32.totalorder %s21, 1
      %p142 = scmp.ne.s32.totalorder %s137, %s139
      %p143 = scmp.eq.s32.totalorder %s21, 0
      %p144 = por %p142, %p143
      %p145 = scmp.ne.s32.totalorder %s137, %s139
      %p146 = scmp.eq.s32.totalorder %s26, 1
      %p147 = por %p145, %p146
      %p148 = scmp.ne.s32.totalorder %s139, %s140
      %p149 = scmp.eq.s32.totalorder %s26, 0
      %p150 = por %p148, %p149
      %p151 = scmp.ne.s32.totalorder %s139, %s140
      %p152 = scmp.eq.s32.totalorder %s27, 1
      %p153 = por %p151, %p152
      %p155 = scmp.ne.s32.totalorder %s140, %s154
      %p156 = scmp.eq.s32.totalorder %s27, 0
      %p157 = por %p155, %p156
      %s159 = sadd.s32 %s158, 1
      %p162 = scmp.eq.s32.totalorder %s21, 1
      %p163 = scmp.ne.s32.totalorder %s158, %s160
      %p164 = scmp.eq.s32.totalorder %s21, 0
      %p165 = por %p163, %p164
      %p166 = scmp.ne.s32.totalorder %s158, %s160
      %p167 = scmp.eq.s32.totalorder %s26, 1
      %p168 = por %p166, %p167
      %p169 = scmp.ne.s32.totalorder %s160, %s161
      %p170 = scmp.eq.s32.totalorder %s26, 0
      %p171 = por %p169, %p170
      %p172 = scmp.ne.s32.totalorder %s160, %s161
      %p173 = scmp.eq.s32.totalorder %s27, 1
      %p174 = por %p172, %p173
      %p176 = scmp.ne.s32.totalorder %s161, %s175
      %p177 = scmp.eq.s32.totalorder %s27, 0
      %p178 = por %p176, %p177
      %s180 = sadd.s32 %s179, 1
      %p183 = scmp.eq.s32.totalorder %s21, 1
      %p184 = scmp.ne.s32.totalorder %s179, %s181
      %p185 = scmp.eq.s32.totalorder %s21, 0
      %p186 = por %p184, %p185
      %p187 = scmp.ne.s32.totalorder %s179, %s181
      %p188 = scmp.eq.s32.totalorder %s26, 1
      %p189 = por %p187, %p188
      %p190 = scmp.ne.s32.totalorder %s181, %s182
      %p191 = scmp.eq.s32.totalorder %s26, 0
      %p192 = por %p190, %p191
      %p193 = scmp.ne.s32.totalorder %s181, %s182
      %p194 = scmp.eq.s32.totalorder %s27, 1
      %p195 = por %p193, %p194
      %p197 = scmp.ne.s32.totalorder %s182, %s196
      %p198 = scmp.eq.s32.totalorder %s27, 0
      %p199 = por %p197, %p198
      %s200 = ssub.s32 %s28, %s40
      %s201 = ssub.s32 %s29, %s36
      %s202 = sor.u32 %s200, %s201
      %p203 = scmp.eq.s32.totalorder %s202, 0
      %s205 = sadd.s32 %s204, 1
      %s206 = scalar_select %p203, %s204, %s205
      %p209 = pneg %p203
      %p210 = scmp.eq.s32.totalorder %s21, 1
      %p211 = por %p209, %p210
      %p212 = scmp.ne.s32.totalorder %s204, %s207
      %p213 = scmp.eq.s32.totalorder %s21, 0
      %p214 = por %p212, %p213
      %p215 = scmp.ne.s32.totalorder %s204, %s207
      %p216 = scmp.eq.s32.totalorder %s26, 1
      %p217 = por %p215, %p216
      %p218 = scmp.ne.s32.totalorder %s207, %s208
      %p219 = scmp.eq.s32.totalorder %s26, 0
      %p220 = por %p218, %p219
      %p221 = scmp.ne.s32.totalorder %s207, %s208
      %p222 = scmp.eq.s32.totalorder %s27, 1
      %p223 = por %p221, %p222
      %p225 = scmp.ne.s32.totalorder %s208, %s224
      %p226 = scmp.eq.s32.totalorder %s27, 0
      %p227 = por %p225, %p226
      %p228 = scmp.le.s32.totalorder 1, %s21
      %p229 = scmp.lt.s32.totalorder %s21, 3
      %p230 = pnand %p228, %p229
      %p231 = pneg %p230
      // Predicated region
      $region9: #{tpu_custom_call.1} parent=5 // pred_check
        _
      $region10: #{tpu_custom_call.1} parent=5 // pred_check_branch
        %233 = sbr.rel (%p230) target = $region12
      $region11: #{tpu_custom_call.1} parent=5 // pred_region
        %s234 = ssub.s32 %s21, 1
        // Predicated region
        $region13: #{tpu_custom_call.1} parent=11 // pred_check
          %p235 = pneg %p150
        $region14: #{tpu_custom_call.1} parent=11 // pred_check_branch
          %237 = sbr.rel (%p235) target = $region16
        $region15: #{tpu_custom_call.1} parent=11 // pred_region
          _
        $region16: #{tpu_custom_call.1} parent=11 // pred_fallthru
          _
        // Predicated region
        $region17: #{tpu_custom_call.1} parent=11 // pred_check
          %p238 = pneg %p171
        $region18: #{tpu_custom_call.1} parent=11 // pred_check_branch
          %240 = sbr.rel (%p238) target = $region20
        $region19: #{tpu_custom_call.1} parent=11 // pred_region
          _
        $region20: #{tpu_custom_call.1} parent=11 // pred_fallthru
          _
        // Predicated region
        $region21: #{tpu_custom_call.1} parent=11 // pred_check
          %p241 = pneg %p192
        $region22: #{tpu_custom_call.1} parent=11 // pred_check_branch
          %243 = sbr.rel (%p241) target = $region24
        $region23: #{tpu_custom_call.1} parent=11 // pred_region
          _
        $region24: #{tpu_custom_call.1} parent=11 // pred_fallthru
          _
      $region12: #{tpu_custom_call.1} parent=5 // pred_fallthru
        _
      %p244 = scmp.lt.s32.totalorder %s21, 2
      // Predicated region
      $region25: #{tpu_custom_call.1} parent=5 // pred_check
        %p245 = pneg %p244
      $region26: #{tpu_custom_call.1} parent=5 // pred_check_branch
        %247 = sbr.rel (%p245) target = $region28
      $region27: #{tpu_custom_call.1} parent=5 // pred_region
        // Predicated region
        $region29: #{tpu_custom_call.1} parent=27 // pred_check
          %p248 = pneg %p55
        $region30: #{tpu_custom_call.1} parent=27 // pred_check_branch
          %250 = sbr.rel (%p248) target = $region32
        $region31: #{tpu_custom_call.1} parent=27 // pred_region
          %s251 = sand.u32 %s45, 1
          %s252 = scalar_lea.sflag [#allocation3], %s251
          %s253 = sand.u32 %s45, 1
          %s254 = smul.addr %s253, 4
          %s255 = scalar_lea.vmem [#allocation2], %s254
          %s257 = ssub.s32 64, 64
          %258 = vsyncadd %s252, %s257
          %s259 = sadd.s32 %s29, %s28
          %s260 = smul.addr %s259, 64
          %s261 = scalar_lea.hbm %s0, %s260
          %s263 = sshll.u32 %s255, 4
          %s264 = int_to_ptr.vmem [resolvable:$true] %s263
          %266 = dma.hbm_to_vmem [thread:$0]  %s261, 64, %s264, %s252
        $region32: #{tpu_custom_call.1} parent=27 // pred_fallthru
          _
        // Predicated region
        $region33: #{tpu_custom_call.1} parent=27 // pred_check
          %p267 = pneg %p89
        $region34: #{tpu_custom_call.1} parent=27 // pred_check_branch
          %269 = sbr.rel (%p267) target = $region36
        $region35: #{tpu_custom_call.1} parent=27 // pred_region
          %s270 = ssub.s32 %s29, 1
          %p271 = scmp.gt.s32.totalorder %s270, 0
          %s272 = scalar_select %p271, %s270, 0
          %p273 = scmp.lt.s32.totalorder %s28, 1
          %s274 = scalar_select %p273, %s28, 1
          %p275 = scmp.lt.s32.totalorder %s272, 0
          %s276 = scalar_select %p275, %s272, 0
          %s277 = sadd.s32 %s276, %s274
          %s278 = smul.addr %s277, 4
          %s279 = scalar_lea.vmem %s1, %s278
          %s280 = ssub.s32 %s29, 1
          %p281 = scmp.gt.s32.totalorder %s280, 0
          %s282 = scalar_select %p281, %s280, 0
        $region36: #{tpu_custom_call.1} parent=27 // pred_fallthru
          _
        // Predicated region
        $region37: #{tpu_custom_call.1} parent=27 // pred_check
          %p283 = pneg %p123
        $region38: #{tpu_custom_call.1} parent=27 // pred_check_branch
          %285 = sbr.rel (%p283) target = $region40
        $region39: #{tpu_custom_call.1} parent=27 // pred_region
          %s286 = sand.u32 %s113, 1
          %s287 = scalar_lea.sflag [#allocation6], %s286
          %s288 = sand.u32 %s113, 1
          %s289 = smul.addr %s288, 4
          %s290 = scalar_lea.vmem [#allocation5], %s289
          %s291 = sadd.s32 %s29, 1
          %p292 = scmp.lt.s32.totalorder %s291, 0
          %s293 = scalar_select %p292, %s291, 0
          %s295 = ssub.s32 64, 64
          %296 = vsyncadd %s287, %s295
          %s297 = sadd.s32 %s293, %s28
          %s298 = smul.addr %s297, 64
          %s299 = scalar_lea.hbm %s2, %s298
          %s301 = sshll.u32 %s290, 4
          %s302 = int_to_ptr.vmem [resolvable:$true] %s301
          %304 = dma.hbm_to_vmem [thread:$0]  %s299, 64, %s302, %s287
        $region40: #{tpu_custom_call.1} parent=27 // pred_fallthru
          _
      $region28: #{tpu_custom_call.1} parent=5 // pred_fallthru
        _
      %p305 = scmp.le.s32.totalorder 1, %s21
      %p306 = scmp.lt.s32.totalorder %s21, 3
      %p307 = pnand %p305, %p306
      %p308 = pneg %p307
      // Predicated region
      $region41: #{tpu_custom_call.1} parent=5 // pred_check
        _
      $region42: #{tpu_custom_call.1} parent=5 // pred_check_branch
        %310 = sbr.rel (%p307) target = $region44
      $region43: #{tpu_custom_call.1} parent=5 // pred_region
        %s311 = ssub.s32 %s21, 1
        %s312 = sand.u32 %s48, 1
        %s313 = scalar_lea.sflag [#allocation3], %s312
        %s314 = sand.u32 %s48, 1
        %s315 = smul.addr %s314, 4
        %s316 = scalar_lea.vmem [#allocation2], %s315
        // Predicated region
        $region45: #{tpu_custom_call.1} parent=43 // pred_check
          %p317 = pneg %p61
        $region46: #{tpu_custom_call.1} parent=43 // pred_check_branch
          %319 = sbr.rel (%p317) target = $region48
        $region47: #{tpu_custom_call.1} parent=43 // pred_region
          %320 = dma.done %s313, 64
        $region48: #{tpu_custom_call.1} parent=43 // pred_fallthru
          _
        %s321 = sand.u32 %s116, 1
        %s322 = scalar_lea.sflag [#allocation6], %s321
        %s323 = sand.u32 %s116, 1
        %s324 = smul.addr %s323, 4
        %s325 = scalar_lea.vmem [#allocation5], %s324
        // Predicated region
        $region49: #{tpu_custom_call.1} parent=43 // pred_check
          %p326 = pneg %p129
        $region50: #{tpu_custom_call.1} parent=43 // pred_check_branch
          %328 = sbr.rel (%p326) target = $region52
        $region51: #{tpu_custom_call.1} parent=43 // pred_region
          %329 = dma.done %s322, 64
        $region52: #{tpu_custom_call.1} parent=43 // pred_fallthru
          _
        %s330 = sand.u32 %s48, 1
        %s331 = scalar_lea.sflag [#allocation3], %s330
        %s332 = sand.u32 %s48, 1
        %s333 = smul.addr %s332, 4
        %s334 = scalar_lea.vmem [#allocation2], %s333
        %p335 = pneg %p61
        %p336 = pneg %p58
        %s337 = ssub.s32 %s31, 1
        %p338 = scmp.gt.s32.totalorder %s337, 0
        %s339 = scalar_select %p338, %s337, 0
        %p340 = scmp.lt.s32.totalorder %s30, 1
        %s341 = scalar_select %p340, %s30, 1
        %p342 = scmp.lt.s32.totalorder %s339, 0
        %s343 = scalar_select %p342, %s339, 0
        %s344 = sadd.s32 %s343, %s341
        %s345 = smul.addr %s344, 4
        %s346 = scalar_lea.vmem %s1, %s345
        %p347 = pneg %p95
        %p348 = pneg %p92
        %s349 = sand.u32 %s116, 1
        %s350 = scalar_lea.sflag [#allocation6], %s349
        %s351 = sand.u32 %s116, 1
        %s352 = smul.addr %s351, 4
        %s353 = scalar_lea.vmem [#allocation5], %s352
        %p354 = pneg %p129
        %p355 = pneg %p126
        %p356 = pneg %p150
        %p357 = pneg %p147
        %p358 = pneg %p171
        %p359 = pneg %p168
        %p360 = pneg %p192
        %p361 = pneg %p189
        %p362 = pneg %p220
        %p363 = pneg %p217
        %s364 = sand.u32 %s207, 1
        %s365 = scalar_lea.sflag [#allocation4], %s364
        %s366 = sand.u32 %s207, 1
        %s367 = smul.addr %s366, 4
        %s368 = scalar_lea.vmem [#allocation7], %s367
        %s369 = ssub.s32 %s31, 1
        %p370 = scmp.gt.s32.totalorder %s369, 0
        %s371 = scalar_select %p370, %s369, 0
        %p372 = scmp.lt.s32.totalorder %s30, 1
        %s373 = scalar_select %p372, %s30, 1
        %p374 = scmp.lt.s32.totalorder %s371, 0
        %s375 = scalar_select %p374, %s371, 0
        %s376 = sadd.s32 %s375, %s373
        %s377 = smul.addr %s376, 4
        %s378 = scalar_lea.vmem %s1, %s377
        %s379 = ssub.s32 %s31, 1
        %p380 = scmp.gt.s32.totalorder %s379, 0
        %s381 = scalar_select %p380, %s379, 0
        %s382 = sadd.s32 %s31, 1
        %p383 = scmp.lt.s32.totalorder %s382, 0
        %s384 = scalar_select %p383, %s382, 0
        %v385 = vld [vmem:[%s316] sm:$0xf]
        %v386 = vld [vmem:[%s378] sm:$0xf]
        %p387 = scmp.eq.s32.totalorder %s31, 0
        %s388 = scalar_select %p387, 1, 0
        %v389 = vstv %s388
        %vm390 = vcmp.eq.s32.totalorder %v389, 1
        %v391 = vsel %vm390, 0.0, %v386
        %v392 = vld [vmem:[%s325] sm:$0xf]
        %v393 = vsel %vm390, 0.0, %v392
        %394 = vrot.lane.b32.xlu0 %v391, 1
        %v395 = vpop.permute.xlu0 %394
        %396 = vrot.lane.b32.xlu0 %v385, 1
        %v397 = vpop.permute.xlu0 %396
        %v398 = vlaneseq
        %v399 = vand.u32 %v398, 127
        %vm400 = vcmp.lt.s32.totalorder %v399, 1
        %v401 = vsel %vm400, %v395, %v397
        %v402 = vld [vmem:[%s3] sm:$0xf]
        %404 = vset.pattern.permute.xlu0 0
        %405 = vperm.xlu0 %404, %v402
        %v406 = vpop.permute.xlu0 %405
        %v408 = vmul.f32 %v406, %v401
        %409 = vset.pattern.permute.xlu0 1
        %410 = vperm.xlu0 %409, %v402
        %v411 = vpop.permute.xlu0 %410
        %v413 = vmul.f32 %v411, %v385
        %v414 = vadd.f32 %v408, %v413
        %415 = vrot.lane.b32.xlu0 %v385, 127
        %v416 = vpop.permute.xlu0 %415
        %417 = vrot.lane.b32.xlu0 %v393, 127
        %v418 = vpop.permute.xlu0 %417
        %vm419 = vcmp.lt.s32.totalorder %v399, 127
        %v420 = vsel %vm419, %v416, %v418
        %421 = vset.pattern.permute.xlu0 2
        %422 = vperm.xlu0 %421, %v402
        %v423 = vpop.permute.xlu0 %422
        %v425 = vmul.f32 %v423, %v420
        %v426 = vadd.f32 %v414, %v425
        %v427 = vld [vmem:[%s4] sm:$0xf]
        %v428 = vld [vmem:[%s5] sm:$0xf]
        %430 = vset.pattern.permute.xlu0 0
        %431 = vperm.xlu0 %430, %v428
        %v432 = vpop.permute.xlu0 %431
        %vm434 = vcmask 31744
        %v436 = vsel %vm434, %v427, 0
        %vm438 = vcmask 1043456
        %v440 = vsel %vm438, %v426, 0
        %442 = vmatprep.subr.mxu0 0.0
        %443 = vmatpush1.msra.mxu0 %v440
        %444 = vmatprep.subr.mxu0 0.0
        %445 = vmatpush1.msra.mxu0 0.0
        %446 = vmatprep.subr.mxu0 0.0
        %447 = vmatpush1.msra.mxu0 0.0
        %448 = vmatprep.subr.mxu0 0.0
        %449 = vmatpush1.msra.mxu0 0.0
        %450 = vmatprep.subr.mxu0 0.0
        %451 = vmatpush1.msra.mxu0 0.0
        %452 = vmatprep.subr.mxu0 0.0
        %453 = vmatpush1.msra.mxu0 0.0
        %454 = vmatprep.subr.mxu0 0.0
        %455 = vmatpush1.msra.mxu0 0.0
        %456 = vmatprep.subr.mxu0 0.0
        %457 = vmatpush1.msra.mxu0 0.0
        %458 = vmatprep.subr.mxu0 0.0
        %459 = vmatpush1.msra.mxu0 0.0
        %460 = vmatprep.subr.mxu0 0.0
        %461 = vmatpush1.msra.mxu0 0.0
        %462 = vmatprep.subr.mxu0 0.0
        %463 = vmatpush1.msra.mxu0 0.0
        %464 = vmatprep.subr.mxu0 0.0
        %465 = vmatpush1.msra.mxu0 0.0
        %466 = vmatprep.subr.mxu0 0.0
        %467 = vmatpush1.msra.mxu0 0.0
        %468 = vmatprep.subr.mxu0 0.0
        %469 = vmatpush1.msra.mxu0 0.0
        %470 = vmatprep.subr.mxu0 0.0
        %471 = vmatpush1.msra.mxu0 0.0
        %472 = vmatprep.subr.mxu0 0.0
        %473 = vmatpush1.msra.mxu0 0.0
        %474 = vmatprep.subr.mxu0 0.0
        %475 = vmatpush1.msra.mxu0 0.0
        %476 = vmatprep.subr.mxu0 0.0
        %477 = vmatpush1.msra.mxu0 0.0
        %478 = vmatprep.subr.mxu0 0.0
        %479 = vmatpush1.msra.mxu0 0.0
        %480 = vmatprep.subr.mxu0 0.0
        %481 = vmatpush1.msra.mxu0 0.0
        %482 = vmatprep.subr.mxu0 0.0
        %483 = vmatpush1.msra.mxu0 0.0
        %484 = vmatprep.subr.mxu0 0.0
        %485 = vmatpush1.msra.mxu0 0.0
        %486 = vmatprep.subr.mxu0 0.0
        %487 = vmatpush1.msra.mxu0 0.0
        %488 = vmatprep.subr.mxu0 0.0
        %489 = vmatpush1.msra.mxu0 0.0
        %490 = vmatprep.subr.mxu0 0.0
        %491 = vmatpush1.msra.mxu0 0.0
        %492 = vmatprep.subr.mxu0 0.0
        %493 = vmatpush1.msra.mxu0 0.0
        %494 = vmatprep.subr.mxu0 0.0
        %495 = vmatpush1.msra.mxu0 0.0
        %496 = vmatprep.subr.mxu0 0.0
        %497 = vmatpush1.msra.mxu0 0.0
        %498 = vmatprep.subr.mxu0 0.0
        %499 = vmatpush1.msra.mxu0 0.0
        %500 = vmatprep.subr.mxu0 0.0
        %501 = vmatpush1.msra.mxu0 0.0
        %502 = vmatprep.subr.mxu0 0.0
        %503 = vmatpush1.msra.mxu0 0.0
        %504 = vmatprep.subr.mxu0 0.0
        %505 = vmatpush1.msra.mxu0 0.0
        %506 = vmatprep.mubr.f32.mxu0 0.0
        %507 = vmatmul.mubr.f32.gmra.mrb[0].mxu0 %v436
        %v508 = vpop.f32.mrb[0].mxu0
        %v509 = vadd.f32 %v432, %v508
        %v510 = vpop.f32.mrb[0].mxu0
        %511 = vdwg.mxu0
        %v512 = vmax.f32 %v509, 0.0
        %v513 = vadd.f32 %v512, %v385
        %514 = vst [vmem:[%s368] sm:$0xf] %v513
        %s515 = sand.u32 %s207, 1
        %s516 = scalar_lea.sflag [#allocation4], %s515
        %s517 = sand.u32 %s207, 1
        %s518 = smul.addr %s517, 4
        %s519 = scalar_lea.vmem [#allocation7], %s518
        // Predicated region
        $region53: #{tpu_custom_call.1} parent=43 // pred_check
          %p520 = pneg %p217
        $region54: #{tpu_custom_call.1} parent=43 // pred_check_branch
          %522 = sbr.rel (%p520) target = $region56
        $region55: #{tpu_custom_call.1} parent=43 // pred_region
          %s524 = ssub.s32 64, 64
          %525 = vsyncadd %s516, %s524
          %s526 = sadd.s32 %s31, %s30
          %s527 = smul.addr %s526, 64
          %s528 = scalar_lea.hbm %s6, %s527
          %s530 = sshll.u32 %s519, 4
          %s531 = int_to_ptr.vmem [resolvable:$true] %s530
          %533 = dma.vmem_to_hbm [thread:$0]  %s531, 64, %s528, %s516
        $region56: #{tpu_custom_call.1} parent=43 // pred_fallthru
          _
      $region44: #{tpu_custom_call.1} parent=5 // pred_fallthru
        _
      %p534 = scmp.le.s32.totalorder 2, %s21
      // Predicated region
      $region57: #{tpu_custom_call.1} parent=5 // pred_check
        %p535 = pneg %p534
      $region58: #{tpu_custom_call.1} parent=5 // pred_check_branch
        %537 = sbr.rel (%p535) target = $region60
      $region59: #{tpu_custom_call.1} parent=5 // pred_region
        %s538 = ssub.s32 %s21, 2
        // Predicated region
        $region61: #{tpu_custom_call.1} parent=59 // pred_check
          %p539 = pneg %p223
        $region62: #{tpu_custom_call.1} parent=59 // pred_check_branch
          %541 = sbr.rel (%p539) target = $region64
        $region63: #{tpu_custom_call.1} parent=59 // pred_region
          %s542 = sand.u32 %s208, 1
          %s543 = scalar_lea.sflag [#allocation4], %s542
          %s544 = sand.u32 %s208, 1
          %s545 = smul.addr %s544, 4
          %s546 = scalar_lea.vmem [#allocation7], %s545
          %547 = dma.done %s543, 64
        $region64: #{tpu_custom_call.1} parent=59 // pred_fallthru
          _
      $region60: #{tpu_custom_call.1} parent=5 // pred_fallthru
        _
    $region6: #{tpu_custom_call.1} parent=1 // loop_footer
      %s25 = sadd.s32 1, %s21
    $region7: #{tpu_custom_call.1} parent=1 // loop_footer_branch
      %20 = sbr.rel target = $region3
    $region8: #{tpu_custom_call.1} parent=1 // loop_exit
      _
    %548 = vsyncpa [#allocation3], 1
    %s549 = scalar_lea.sflag [#allocation3], 1
    %550 = vsyncpa %s549, 1
    %551 = vsyncpa [#allocation6], 1
    %s552 = scalar_lea.sflag [#allocation6], 1
    %553 = vsyncpa %s552, 1
    %554 = vsyncpa [#allocation4], 1
    %s555 = scalar_lea.sflag [#allocation4], 1
    %556 = vsyncpa %s555, 1

</llo_original>
